<compile_context>
chip_gen: v7x
topology: tpu7x:2x2x1
jax: 0.10.0
libtpu: 0.0.40
codegen_flags: <defaults>
</compile_context>

<pallas_src>
import functools

import jax
import jax.numpy as jnp
from jax.experimental import pallas as pl
from jax.experimental.pallas import tpu as pltpu

_EPS = 1e-07
_LANE = 128
_TARGET_BLOCK_BYTES = 4 << 20    # per-input block: 2 inputs x 2 buffers = 16 MiB VMEM
_CHUNK_BYTES = 256 << 10         # fused-reduction sub-chunk (512 rows @ f32, 1024 @ bf16)
_VMEM_LIMIT_BYTES = 40 << 20     # > ~17 MiB actual use, < v7x's 64 MiB physical VMEM


def _dice_partials_kernel(pr_ref, gt_ref, out_ref, *, rows, blocks_per_core,
                          chunk_rows):
    c = pl.program_id(0)          # TensorCore split ("parallel")
    i = pl.program_id(1)          # row-block stream ("arbitrary")

    @pl.when(i == 0)
    def _init():
        out_ref[...] = jnp.zeros_like(out_ref)

    block_rows, lanes = pr_ref.shape
    nchunks = block_rows // chunk_rows
    start_row = (c * blocks_per_core + i) * block_rows
    end_row = start_row + block_rows

    def accumulate(masked):
        def chunk_step(k, carry):
            tp_a, p_a, g_a = carry
            r0 = pl.multiple_of(k * chunk_rows, 8)
            # Load slices directly and fold immediately -> only a few live
            # vregs per sub-chunk, no full-block f32 temporaries.
            p = jax.nn.sigmoid(
                pr_ref[pl.ds(r0, chunk_rows), :].astype(jnp.float32))
            g = gt_ref[pl.ds(r0, chunk_rows), :].astype(jnp.float32)
            if masked:
                # (chunk_rows, 1) row mask; only the edge block pays for this.
                row_id = start_row + r0 + jax.lax.broadcasted_iota(
                    jnp.int32, (chunk_rows, 1), 0)
                valid = row_id < rows
                p = jnp.where(valid, p, 0.0)
                g = jnp.where(valid, g, 0.0)

            def fold(x):
                # (chunk_rows, 128) -> (8, 128): leading-axis sum = pure VALU
                # adds, no per-step cross-lane/sublane reduction via the XLU.
                return x.reshape(chunk_rows // 8, 8, lanes).sum(axis=0)

            return tp_a + fold(g * p), p_a + fold(p), g_a + fold(g)

        zero = jnp.zeros((8, lanes), jnp.float32)
        tp_a, p_a, g_a = jax.lax.fori_loop(
            0, nchunks, chunk_step, (zero, zero, zero), unroll=True)
        out_ref[0, 0, :, :] += tp_a   # sum(gt * p)  (tp)
        out_ref[0, 1, :, :] += p_a    # sum(p)
        out_ref[0, 2, :, :] += g_a    # sum(gt)

    @pl.when(end_row <= rows)
    def _interior():                  # fully valid block: maskless fast path
        accumulate(masked=False)

    @pl.when(jnp.logical_and(start_row < rows, end_row > rows))
    def _edge():                      # last / overhanging block: row-masked
        accumulate(masked=True)
    # Blocks with start_row >= rows (clamped duplicates from the 2-way core
    # split with an odd block count) skip compute entirely.


def _partial_sums(pr2, gt2, rows, block_rows, chunk_rows):
    num_blocks = -(-rows // block_rows)
    ncores = 2 if num_blocks >= 2 else 1      # v7x megacore split
    blocks_per_core = -(-num_blocks // ncores)

    def in_map(c, i):
        # Clamp so an odd block count never maps a block fully out of bounds;
        # the kernel skips compute for such duplicated blocks.
        return (jnp.minimum(c * blocks_per_core + i, num_blocks - 1), 0)

    partials = pl.pallas_call(
        functools.partial(_dice_partials_kernel, rows=rows,
                          blocks_per_core=blocks_per_core,
                          chunk_rows=chunk_rows),
        out_shape=jax.ShapeDtypeStruct((ncores, 3, 8, _LANE), jnp.float32),
        grid_spec=pltpu.PrefetchScalarGridSpec(
            num_scalar_prefetch=0,
            grid=(ncores, blocks_per_core),
            in_specs=[
                pl.BlockSpec((block_rows, _LANE), in_map),
                pl.BlockSpec((block_rows, _LANE), in_map),
            ],
            out_specs=pl.BlockSpec((1, 3, 8, _LANE),
                                   lambda c, i: (c, 0, 0, 0)),
        ),
        compiler_params=pltpu.CompilerParams(
            dimension_semantics=("parallel", "arbitrary"),
            vmem_limit_bytes=_VMEM_LIMIT_BYTES),
    )(pr2, gt2)

    return jnp.sum(partials, axis=(0, 2, 3))   # [sum(g*p), sum(p), sum(g)]


def bce_focal_loss(y_pr, y_gt, eps=_EPS, block_rows_cap=None):
    """BCEFocalLoss.forward == 2 * (1 - f_score(sigmoid(y_pr), y_gt, beta=1))."""
    assert y_pr.shape == y_gt.shape
    pr_flat = y_pr.reshape(-1)
    gt_flat = y_gt.reshape(-1)
    total = pr_flat.shape[0]
    aligned = (total // _LANE) * _LANE
    rows = aligned // _LANE

    tp = jnp.float32(0.0)
    sp = jnp.float32(0.0)
    sg = jnp.float32(0.0)

    if rows > 0:
        itemsize = max(jnp.dtype(y_pr.dtype).itemsize,
                       jnp.dtype(y_gt.dtype).itemsize)
        rows_up8 = -(-rows // 8) * 8
        chunk_rows = min(max(_CHUNK_BYTES // (_LANE * itemsize), 8), rows_up8)
        cap_rows = _TARGET_BLOCK_BYTES // (_LANE * itemsize)
        if block_rows_cap is not None:
            cap_rows = min(cap_rows, block_rows_cap)
        cap_rows = max(chunk_rows, (cap_rows // chunk_rows) * chunk_rows)
        block_rows = min(cap_rows, -(-rows_up8 // chunk_rows) * chunk_rows)

        # Aligned prefix only; no padded HBM copy is created.
        pr2 = (pr_flat if aligned == total
               else pr_flat[:aligned]).reshape(rows, _LANE)
        gt2 = (gt_flat if aligned == total
               else gt_flat[:aligned]).reshape(rows, _LANE)
        sums = _partial_sums(pr2, gt2, rows, block_rows, chunk_rows)
        tp, sp, sg = sums[0], sums[1], sums[2]

    if aligned != total:
        # <128-element ragged tail: reduce in plain JAX (negligible cost).
        p_t = jax.nn.sigmoid(pr_flat[aligned:].astype(jnp.float32))
        g_t = gt_flat[aligned:].astype(jnp.float32)
        tp = tp + jnp.sum(g_t * p_t)
        sp = sp + jnp.sum(p_t)
        sg = sg + jnp.sum(g_t)

    fp = sp - tp
    fn = sg - tp
    # beta = 1 -> (1 + beta^2) = 2, beta^2 = 1
    score = (2.0 * tp + eps) / (2.0 * tp + fn + fp + eps)
    dice = 1.0 - score
    return dice + dice   # dice + f_loss, where f_loss == dice (MRO quirk)


def _reference(y_pr, y_gt, eps=_EPS):
    p = jax.nn.sigmoid(y_pr.astype(jnp.float32))
    g = y_gt.astype(jnp.float32)
    tp = jnp.sum(g * p)
    fp = jnp.sum(p) - tp
    fn = jnp.sum(g) - tp
    score = (2.0 * tp + eps) / (2.0 * tp + fn + fp + eps)
    return 2.0 * (1.0 - score)


if __name__ == "__main__":
    key = jax.random.PRNGKey(0)
    k1, k2, k3, k4 = jax.random.split(key, 4)

    # 1) small NCHW-shaped example consistent with a segmentation loss;
    #    total % 128 == 0 -> single maskless interior block, zero copies.
    y_pr = jax.random.normal(k1, (2, 4, 16, 16), dtype=jnp.float32)   # logits
    y_gt = (jax.random.uniform(k2, (2, 4, 16, 16)) > 0.5).astype(jnp.float32)
    loss = bce_focal_loss(y_pr, y_gt)
    jax.block_until_ready(loss)
    assert jnp.allclose(loss, _reference(y_pr, y_gt), rtol=1e-5, atol=1e-6), (
        loss, _reference(y_pr, y_gt))

    # 2) ragged total (% 128 != 0) -> aligned-prefix kernel + edge-row mask +
    #    plain-JAX tail, no padded copy.
    y_pr2 = jax.random.normal(k3, (2, 3, 17, 19), dtype=jnp.float32)
    y_gt2 = (jax.random.uniform(k4, (2, 3, 17, 19)) > 0.5).astype(jnp.float32)
    loss2 = bce_focal_loss(y_pr2, y_gt2)
    jax.block_until_ready(loss2)
    assert jnp.allclose(loss2, _reference(y_pr2, y_gt2), rtol=1e-5, atol=1e-6)

    # 3) native bf16, small block cap to exercise multi-block streaming, the
    #    2-way core split, a clamped duplicate block and the masked edge block.
    y_pr3 = jax.random.normal(k1, (1, 5, 1000, 128),
                              dtype=jnp.float32).astype(jnp.bfloat16)
    y_gt3 = (jax.random.uniform(k2, (1, 5, 1000, 128)) > 0.5
             ).astype(jnp.bfloat16)
    loss3 = bce_focal_loss(y_pr3, y_gt3, block_rows_cap=2048)
    jax.block_until_ready(loss3)
    assert jnp.allclose(loss3, _reference(y_pr3, y_gt3), rtol=1e-4, atol=1e-5)

    print("KERNEL_OK")
</pallas_src>

<mosaic_0001>
module attributes {stable_mosaic.version = 11 : i64} {
  func.func @_dice_partials_kernel(%arg0: i32, %arg1: i32, %arg2: memref<16x128xf32, #tpu.memory_space<vmem>>, %arg3: memref<16x128xf32, #tpu.memory_space<vmem>>, %arg4: memref<1x3x8x128xf32, #tpu.memory_space<vmem>>) attributes {dimension_semantics = [#tpu.dimension_semantics<parallel>, #tpu.dimension_semantics<arbitrary>], iteration_bounds = array<i64: 1, 1>, scalar_prefetch = 0 : i64, scratch_operands = 0 : i64, tpu.core_type = #tpu.core_type<tc>, window_params = [{transform_indices = @transform_0, window_bounds = array<i64: 16, 128>}, {transform_indices = @transform_1, window_bounds = array<i64: 16, 128>}, {transform_indices = @transform_2, window_bounds = array<i64: 1, 3, 8, 128>}]} {
    %c0_i32 = arith.constant 0 : i32
    %0 = arith.cmpi eq, %arg1, %c0_i32 : i32
    %1 = arith.extui %0 : i1 to i32
    %c0_i32_0 = arith.constant 0 : i32
    %2 = arith.cmpi ne, %1, %c0_i32_0 : i32
    scf.if %2 {
      %cst = arith.constant 0.000000e+00 : f32
      %15 = vector.broadcast %cst : f32 to vector<1x3x8x128xf32>
      %c0 = arith.constant 0 : index
      %c0_7 = arith.constant 0 : index
      %c0_8 = arith.constant 0 : index
      %c0_9 = arith.constant 0 : index
      %16 = vector.load %arg4[%c0, %c0_7, %c0_8, %c0_9] : memref<1x3x8x128xf32, #tpu.memory_space<vmem>>, vector<1x3x8x128xf32>
      tpu.vector_store %arg4[%c0, %c0_7, %c0_8, %c0_9], %15 {strides = array<i32>} : memref<1x3x8x128xf32, #tpu.memory_space<vmem>>, vector<1x3x8x128xf32>,
    } else {
    }
    %c1_i32 = arith.constant 1 : i32
    %3 = arith.muli %arg0, %c1_i32 : i32
    %4 = arith.addi %3, %arg1 : i32
    %c16_i32 = arith.constant 16 : i32
    %5 = arith.muli %4, %c16_i32 : i32
    %c16_i32_1 = arith.constant 16 : i32
    %6 = arith.addi %5, %c16_i32_1 : i32
    %c16_i32_2 = arith.constant 16 : i32
    %7 = arith.cmpi sle, %6, %c16_i32_2 : i32
    %8 = arith.extui %7 : i1 to i32
    %c0_i32_3 = arith.constant 0 : i32
    %9 = arith.cmpi ne, %8, %c0_i32_3 : i32
    scf.if %9 {
      %cst = arith.constant 0.000000e+00 : f32
      %15 = vector.broadcast %cst : f32 to vector<8x128xf32>
      %c0_i32_7 = arith.constant 0 : i32
      %c16_i32_8 = arith.constant 16 : i32
      %16 = arith.muli %c0_i32_7, %c16_i32_8 : i32
      %17 = tpu.assume_multiple %16, 8 : i32
      %18 = arith.index_cast %17 : i32 to index
      %c0 = arith.constant 0 : index
      %19 = vector.load %arg2[%18, %c0] : memref<16x128xf32, #tpu.memory_space<vmem>>, vector<16x128xf32>
      %20 = arith.negf %19 : vector<16x128xf32>
      %21 = math.exp %20 : vector<16x128xf32>
      %cst_9 = arith.constant 1.000000e+00 : f32
      %22 = vector.broadcast %cst_9 : f32 to vector<16x128xf32>
      %23 = arith.addf %22, %21 : vector<16x128xf32>
      %24 = arith.divf %22, %23 : vector<16x128xf32>
      %25 = arith.index_cast %17 : i32 to index
      %c0_10 = arith.constant 0 : index
      %26 = vector.load %arg3[%25, %c0_10] : memref<16x128xf32, #tpu.memory_space<vmem>>, vector<16x128xf32>
      %27 = arith.mulf %26, %24 : vector<16x128xf32>
      %28 = vector.shape_cast %27 : vector<16x128xf32> to vector<2x8x128xf32>
      %cst_11 = arith.constant dense<0.000000e+00> : vector<8x128xf32>
      %29 = vector.multi_reduction <add>, %28, %cst_11 [0] : vector<2x8x128xf32> to vector<8x128xf32>
      %30 = arith.addf %15, %29 : vector<8x128xf32>
      %31 = vector.shape_cast %24 : vector<16x128xf32> to vector<2x8x128xf32>
      %cst_12 = arith.constant dense<0.000000e+00> : vector<8x128xf32>
      %32 = vector.multi_reduction <add>, %31, %cst_12 [0] : vector<2x8x128xf32> to vector<8x128xf32>
      %33 = arith.addf %15, %32 : vector<8x128xf32>
      %34 = vector.shape_cast %26 : vector<16x128xf32> to vector<2x8x128xf32>
      %cst_13 = arith.constant dense<0.000000e+00> : vector<8x128xf32>
      %35 = vector.multi_reduction <add>, %34, %cst_13 [0] : vector<2x8x128xf32> to vector<8x128xf32>
      %36 = arith.addf %15, %35 : vector<8x128xf32>
      %c1_i32_14 = arith.constant 1 : i32
      %c0_15 = arith.constant 0 : index
      %c0_16 = arith.constant 0 : index
      %c0_17 = arith.constant 0 : index
      %c0_18 = arith.constant 0 : index
      %37 = vector.load %arg4[%c0_15, %c0_16, %c0_17, %c0_18] : memref<1x3x8x128xf32, #tpu.memory_space<vmem>>, vector<1x1x8x128xf32>
      %38 = vector.shape_cast %37 : vector<1x1x8x128xf32> to vector<8x128xf32>
      %39 = arith.addf %38, %30 : vector<8x128xf32>
      %c0_19 = arith.constant 0 : index
      %c0_20 = arith.constant 0 : index
      %c0_21 = arith.constant 0 : index
      %c0_22 = arith.constant 0 : index
      %40 = vector.load %arg4[%c0_19, %c0_20, %c0_21, %c0_22] : memref<1x3x8x128xf32, #tpu.memory_space<vmem>>, vector<1x1x8x128xf32>
      %41 = vector.shape_cast %40 : vector<1x1x8x128xf32> to vector<8x128xf32>
      %42 = vector.shape_cast %39 : vector<8x128xf32> to vector<1x1x8x128xf32>
      tpu.vector_store %arg4[%c0_19, %c0_20, %c0_21, %c0_22], %42 {strides = array<i32>} : memref<1x3x8x128xf32, #tpu.memory_space<vmem>>, vector<1x1x8x128xf32>,
      %c0_23 = arith.constant 0 : index
      %c1 = arith.constant 1 : index
      %c0_24 = arith.constant 0 : index
      %c0_25 = arith.constant 0 : index
      %43 = vector.load %arg4[%c0_23, %c1, %c0_24, %c0_25] : memref<1x3x8x128xf32, #tpu.memory_space<vmem>>, vector<1x1x8x128xf32>
      %44 = vector.shape_cast %43 : vector<1x1x8x128xf32> to vector<8x128xf32>
      %45 = arith.addf %44, %33 : vector<8x128xf32>
      %c0_26 = arith.constant 0 : index
      %c1_27 = arith.constant 1 : index
      %c0_28 = arith.constant 0 : index
      %c0_29 = arith.constant 0 : index
      %46 = vector.load %arg4[%c0_26, %c1_27, %c0_28, %c0_29] : memref<1x3x8x128xf32, #tpu.memory_space<vmem>>, vector<1x1x8x128xf32>
      %47 = vector.shape_cast %46 : vector<1x1x8x128xf32> to vector<8x128xf32>
      %48 = vector.shape_cast %45 : vector<8x128xf32> to vector<1x1x8x128xf32>
      tpu.vector_store %arg4[%c0_26, %c1_27, %c0_28, %c0_29], %48 {strides = array<i32>} : memref<1x3x8x128xf32, #tpu.memory_space<vmem>>, vector<1x1x8x128xf32>,
      %c0_30 = arith.constant 0 : index
      %c2 = arith.constant 2 : index
      %c0_31 = arith.constant 0 : index
      %c0_32 = arith.constant 0 : index
      %49 = vector.load %arg4[%c0_30, %c2, %c0_31, %c0_32] : memref<1x3x8x128xf32, #tpu.memory_space<vmem>>, vector<1x1x8x128xf32>
      %50 = vector.shape_cast %49 : vector<1x1x8x128xf32> to vector<8x128xf32>
      %51 = arith.addf %50, %36 : vector<8x128xf32>
      %c0_33 = arith.constant 0 : index
      %c2_34 = arith.constant 2 : index
      %c0_35 = arith.constant 0 : index
      %c0_36 = arith.constant 0 : index
      %52 = vector.load %arg4[%c0_33, %c2_34, %c0_35, %c0_36] : memref<1x3x8x128xf32, #tpu.memory_space<vmem>>, vector<1x1x8x128xf32>
      %53 = vector.shape_cast %52 : vector<1x1x8x128xf32> to vector<8x128xf32>
      %54 = vector.shape_cast %51 : vector<8x128xf32> to vector<1x1x8x128xf32>
      tpu.vector_store %arg4[%c0_33, %c2_34, %c0_35, %c0_36], %54 {strides = array<i32>} : memref<1x3x8x128xf32, #tpu.memory_space<vmem>>, vector<1x1x8x128xf32>,
    } else {
    }
    %c16_i32_4 = arith.constant 16 : i32
    %10 = arith.cmpi slt, %5, %c16_i32_4 : i32
    %c16_i32_5 = arith.constant 16 : i32
    %11 = arith.cmpi sgt, %6, %c16_i32_5 : i32
    %12 = arith.andi %10, %11 : i1
    %13 = arith.extui %12 : i1 to i32
    %c0_i32_6 = arith.constant 0 : i32
    %14 = arith.cmpi ne, %13, %c0_i32_6 : i32
    scf.if %14 {
      %cst = arith.constant 0.000000e+00 : f32
      %15 = vector.broadcast %cst : f32 to vector<8x128xf32>
      %c0_i32_7 = arith.constant 0 : i32
      %c16_i32_8 = arith.constant 16 : i32
      %16 = arith.muli %c0_i32_7, %c16_i32_8 : i32
      %17 = tpu.assume_multiple %16, 8 : i32
      %18 = arith.index_cast %17 : i32 to index
      %c0 = arith.constant 0 : index
      %19 = vector.load %arg2[%18, %c0] : memref<16x128xf32, #tpu.memory_space<vmem>>, vector<16x128xf32>
      %20 = arith.negf %19 : vector<16x128xf32>
      %21 = math.exp %20 : vector<16x128xf32>
      %cst_9 = arith.constant 1.000000e+00 : f32
      %22 = vector.broadcast %cst_9 : f32 to vector<16x128xf32>
      %23 = arith.addf %22, %21 : vector<16x128xf32>
      %24 = arith.divf %22, %23 : vector<16x128xf32>
      %25 = arith.index_cast %17 : i32 to index
      %c0_10 = arith.constant 0 : index
      %26 = vector.load %arg3[%25, %c0_10] : memref<16x128xf32, #tpu.memory_space<vmem>>, vector<16x128xf32>
      %27 = arith.addi %5, %17 : i32
      %28 = tpu.iota {dimensions = array<i32: 0>} : vector<16x1xi32>
      %29 = vector.broadcast %27 : i32 to vector<16x1xi32>
      %30 = arith.addi %29, %28 : vector<16x1xi32>
      %c16_i32_11 = arith.constant 16 : i32
      %31 = vector.broadcast %c16_i32_11 : i32 to vector<16x1xi32>
      %32 = arith.cmpi slt, %30, %31 : vector<16x1xi32>
      %cst_12 = arith.constant 0.000000e+00 : f32
      %33 = vector.shape_cast %32 : vector<16x1xi1> to vector<16x1xi1>
      %34 = vector.broadcast %33 : vector<16x1xi1> to vector<16x128xi1>
      %35 = vector.broadcast %cst_12 : f32 to vector<16x128xf32>
      %36 = arith.select %34, %24, %35 : vector<16x128xi1>, vector<16x128xf32>
      %cst_13 = arith.constant 0.000000e+00 : f32
      %37 = vector.shape_cast %32 : vector<16x1xi1> to vector<16x1xi1>
      %38 = vector.broadcast %37 : vector<16x1xi1> to vector<16x128xi1>
      %39 = vector.broadcast %cst_13 : f32 to vector<16x128xf32>
      %40 = arith.select %38, %26, %39 : vector<16x128xi1>, vector<16x128xf32>
      %41 = arith.mulf %40, %36 : vector<16x128xf32>
      %42 = vector.shape_cast %41 : vector<16x128xf32> to vector<2x8x128xf32>
      %cst_14 = arith.constant dense<0.000000e+00> : vector<8x128xf32>
      %43 = vector.multi_reduction <add>, %42, %cst_14 [0] : vector<2x8x128xf32> to vector<8x128xf32>
      %44 = arith.addf %15, %43 : vector<8x128xf32>
      %45 = vector.shape_cast %36 : vector<16x128xf32> to vector<2x8x128xf32>
      %cst_15 = arith.constant dense<0.000000e+00> : vector<8x128xf32>
      %46 = vector.multi_reduction <add>, %45, %cst_15 [0] : vector<2x8x128xf32> to vector<8x128xf32>
      %47 = arith.addf %15, %46 : vector<8x128xf32>
      %48 = vector.shape_cast %40 : vector<16x128xf32> to vector<2x8x128xf32>
      %cst_16 = arith.constant dense<0.000000e+00> : vector<8x128xf32>
      %49 = vector.multi_reduction <add>, %48, %cst_16 [0] : vector<2x8x128xf32> to vector<8x128xf32>
      %50 = arith.addf %15, %49 : vector<8x128xf32>
      %c1_i32_17 = arith.constant 1 : i32
      %c0_18 = arith.constant 0 : index
      %c0_19 = arith.constant 0 : index
      %c0_20 = arith.constant 0 : index
      %c0_21 = arith.constant 0 : index
      %51 = vector.load %arg4[%c0_18, %c0_19, %c0_20, %c0_21] : memref<1x3x8x128xf32, #tpu.memory_space<vmem>>, vector<1x1x8x128xf32>
      %52 = vector.shape_cast %51 : vector<1x1x8x128xf32> to vector<8x128xf32>
      %53 = arith.addf %52, %44 : vector<8x128xf32>
      %c0_22 = arith.constant 0 : index
      %c0_23 = arith.constant 0 : index
      %c0_24 = arith.constant 0 : index
      %c0_25 = arith.constant 0 : index
      %54 = vector.load %arg4[%c0_22, %c0_23, %c0_24, %c0_25] : memref<1x3x8x128xf32, #tpu.memory_space<vmem>>, vector<1x1x8x128xf32>
      %55 = vector.shape_cast %54 : vector<1x1x8x128xf32> to vector<8x128xf32>
      %56 = vector.shape_cast %53 : vector<8x128xf32> to vector<1x1x8x128xf32>
      tpu.vector_store %arg4[%c0_22, %c0_23, %c0_24, %c0_25], %56 {strides = array<i32>} : memref<1x3x8x128xf32, #tpu.memory_space<vmem>>, vector<1x1x8x128xf32>,
      %c0_26 = arith.constant 0 : index
      %c1 = arith.constant 1 : index
      %c0_27 = arith.constant 0 : index
      %c0_28 = arith.constant 0 : index
      %57 = vector.load %arg4[%c0_26, %c1, %c0_27, %c0_28] : memref<1x3x8x128xf32, #tpu.memory_space<vmem>>, vector<1x1x8x128xf32>
      %58 = vector.shape_cast %57 : vector<1x1x8x128xf32> to vector<8x128xf32>
      %59 = arith.addf %58, %47 : vector<8x128xf32>
      %c0_29 = arith.constant 0 : index
      %c1_30 = arith.constant 1 : index
      %c0_31 = arith.constant 0 : index
      %c0_32 = arith.constant 0 : index
      %60 = vector.load %arg4[%c0_29, %c1_30, %c0_31, %c0_32] : memref<1x3x8x128xf32, #tpu.memory_space<vmem>>, vector<1x1x8x128xf32>
      %61 = vector.shape_cast %60 : vector<1x1x8x128xf32> to vector<8x128xf32>
      %62 = vector.shape_cast %59 : vector<8x128xf32> to vector<1x1x8x128xf32>
      tpu.vector_store %arg4[%c0_29, %c1_30, %c0_31, %c0_32], %62 {strides = array<i32>} : memref<1x3x8x128xf32, #tpu.memory_space<vmem>>, vector<1x1x8x128xf32>,
      %c0_33 = arith.constant 0 : index
      %c2 = arith.constant 2 : index
      %c0_34 = arith.constant 0 : index
      %c0_35 = arith.constant 0 : index
      %63 = vector.load %arg4[%c0_33, %c2, %c0_34, %c0_35] : memref<1x3x8x128xf32, #tpu.memory_space<vmem>>, vector<1x1x8x128xf32>
      %64 = vector.shape_cast %63 : vector<1x1x8x128xf32> to vector<8x128xf32>
      %65 = arith.addf %64, %50 : vector<8x128xf32>
      %c0_36 = arith.constant 0 : index
      %c2_37 = arith.constant 2 : index
      %c0_38 = arith.constant 0 : index
      %c0_39 = arith.constant 0 : index
      %66 = vector.load %arg4[%c0_36, %c2_37, %c0_38, %c0_39] : memref<1x3x8x128xf32, #tpu.memory_space<vmem>>, vector<1x1x8x128xf32>
      %67 = vector.shape_cast %66 : vector<1x1x8x128xf32> to vector<8x128xf32>
      %68 = vector.shape_cast %65 : vector<8x128xf32> to vector<1x1x8x128xf32>
      tpu.vector_store %arg4[%c0_36, %c2_37, %c0_38, %c0_39], %68 {strides = array<i32>} : memref<1x3x8x128xf32, #tpu.memory_space<vmem>>, vector<1x1x8x128xf32>,
    } else {
    }
    return
  }
  func.func @transform_0(%arg0: i32, %arg1: i32) -> (i32, i32) {
    %c1_i32 = arith.constant 1 : i32
    %0 = arith.muli %arg0, %c1_i32 : i32
    %1 = arith.addi %0, %arg1 : i32
    %c0_i32 = arith.constant 0 : i32
    %2 = arith.minsi %1, %c0_i32 : i32
    %c0_i32_0 = arith.constant 0 : i32
    %c0_i32_1 = arith.constant 0 : i32
    return %2, %c0_i32_0 : i32, i32
  }
  func.func @transform_1(%arg0: i32, %arg1: i32) -> (i32, i32) {
    %c1_i32 = arith.constant 1 : i32
    %0 = arith.muli %arg0, %c1_i32 : i32
    %1 = arith.addi %0, %arg1 : i32
    %c0_i32 = arith.constant 0 : i32
    %2 = arith.minsi %1, %c0_i32 : i32
    %c0_i32_0 = arith.constant 0 : i32
    %c0_i32_1 = arith.constant 0 : i32
    return %2, %c0_i32_0 : i32, i32
  }
  func.func @transform_2(%arg0: i32, %arg1: i32) -> (i32, i32, i32, i32) {
    %c0_i32 = arith.constant 0 : i32
    %c0_i32_0 = arith.constant 0 : i32
    %c0_i32_1 = arith.constant 0 : i32
    %c0_i32_2 = arith.constant 0 : i32
    return %arg0, %c0_i32, %c0_i32_0, %c0_i32_1 : i32, i32, i32, i32
  }
}

</mosaic_0001>

<llo_original>
// kernel: tpu_custom_call.1
$region0: #{tpu_custom_call.1}
  #allocation0 [shape = 'u32[]', space=smem, size = 0x4, offset = 0x4, fixed_abs, tag = 'smem constant byte address 0x4 - core index']
  #allocation1 [shape = 'u32[144,128]{1,0:T(1,128)}', space=vmem, size = 0x12000, scoped, tag = 'internal scratch']
  %s0 = inlined_call_operand.hbm [shape: f32[16,128], index: 0, kind: input, shape index: {}]
  %s1 = inlined_call_operand.hbm [shape: f32[16,128], index: 1, kind: input, shape index: {}]
  %s2 = inlined_call_operand.hbm [shape: f32[1,3,8,128], index: 2, kind: output, shape index: {}]
  %s3 = sld [smem:[#allocation0]]
  $region38: #{tpu_custom_call.1} parent=0
    _
  %s5 = ssub.s32 1, %s3
  %s6 = scalar_select 0, %s5, %s3
  $region1: #{tpu_custom_call.1} parent=0
    #allocation2 [shape = 'u8[8192]{0}', space=vmem, size = 0x2000, scoped, tag = 'input window, operand 0, single buffered']
    #allocation3 [shape = 's32[1]{0}', space=sflag, size = 0x4, scoped, tag = 'scoped memory for tpu_custom_call.1']
    #allocation4 [shape = 's32[1]{0}', space=sflag, size = 0x4, scoped, tag = 'scoped memory for tpu_custom_call.1']
    #allocation5 [shape = 'u8[8192]{0}', space=vmem, size = 0x2000, scoped, tag = 'input window, operand 1, single buffered']
    #allocation6 [shape = 's32[1]{0}', space=sflag, size = 0x4, scoped, tag = 'scoped memory for tpu_custom_call.1']
    #allocation7 [shape = 'u8[12288]{0}', space=vmem, size = 0x3000, scoped, tag = 'output window, operand 0, single buffered']
    %7 = vsyncpa [#allocation3], 0
    %8 = vsyncpa [#allocation6], 0
    %9 = vsyncpa [#allocation4], 0
    // Predicated region
    $region2: #{tpu_custom_call.1} parent=1 // pred_check
      _
    $region3: #{tpu_custom_call.1} parent=1 // pred_check_branch
      %11 = sbr.rel (0) target = $region5
    $region4: #{tpu_custom_call.1} parent=1 // pred_region
      %s12 = sadd.s32 0, 0
      %p13 = scmp.lt.s32.totalorder %s12, 0
      %s14 = scalar_select %p13, %s12, 0
      %s15 = smul.u32 2, %s14
      %s17 = ssub.s32 256, 256
      %18 = vsyncadd [#allocation3], %s17
      %s19 = smul.addr %s15, 128
      %s20 = scalar_lea.hbm %s0, %s19
      %s21 = sshll.u32 [#allocation2], 4
      %s22 = int_to_ptr.vmem [resolvable:$true] %s21
      %27 = dma.hbm_to_vmem [thread:$0]  %s20, 256, %s22, [#allocation3], 128, 128, 8
    $region5: #{tpu_custom_call.1} parent=1 // pred_fallthru
      _
    // Predicated region
    $region6: #{tpu_custom_call.1} parent=1 // pred_check
      _
    $region7: #{tpu_custom_call.1} parent=1 // pred_check_branch
      %29 = sbr.rel (0) target = $region9
    $region8: #{tpu_custom_call.1} parent=1 // pred_region
      %s30 = sadd.s32 0, 0
      %p31 = scmp.lt.s32.totalorder %s30, 0
      %s32 = scalar_select %p31, %s30, 0
      %s33 = smul.u32 2, %s32
      %s35 = ssub.s32 256, 256
      %36 = vsyncadd [#allocation6], %s35
      %s37 = smul.addr %s33, 128
      %s38 = scalar_lea.hbm %s1, %s37
      %s39 = sshll.u32 [#allocation5], 4
      %s40 = int_to_ptr.vmem [resolvable:$true] %s39
      %45 = dma.hbm_to_vmem [thread:$0]  %s38, 256, %s40, [#allocation6], 128, 128, 8
    $region9: #{tpu_custom_call.1} parent=1 // pred_fallthru
      _
    // Predicated region
    $region10: #{tpu_custom_call.1} parent=1 // pred_check
      _
    $region11: #{tpu_custom_call.1} parent=1 // pred_check_branch
      %47 = sbr.rel (0) target = $region13
    $region12: #{tpu_custom_call.1} parent=1 // pred_region
      %48 = dma.done [#allocation3], 256
    $region13: #{tpu_custom_call.1} parent=1 // pred_fallthru
      _
    // Predicated region
    $region14: #{tpu_custom_call.1} parent=1 // pred_check
      _
    $region15: #{tpu_custom_call.1} parent=1 // pred_check_branch
      %50 = sbr.rel (0) target = $region17
    $region16: #{tpu_custom_call.1} parent=1 // pred_region
      %51 = dma.done [#allocation6], 256
    $region17: #{tpu_custom_call.1} parent=1 // pred_fallthru
      _
    %s52 = sadd.s32 0, 0
    %p53 = scmp.lt.s32.totalorder %s52, 0
    %s54 = scalar_select %p53, %s52, 0
    %s55 = smul.u32 2, %s54
    %s56 = sadd.s32 0, 0
    %p57 = scmp.lt.s32.totalorder %s56, 0
    %s58 = scalar_select %p57, %s56, 0
    %s59 = smul.u32 2, %s58
    %p60 = scmp.eq.s32.totalorder 0, 0
    // Predicated region
    $region18: #{tpu_custom_call.1} parent=1 // pred_check
      %p61 = pneg %p60
    $region19: #{tpu_custom_call.1} parent=1 // pred_check_branch
      %63 = sbr.rel (%p61) target = $region21
    $region20: #{tpu_custom_call.1} parent=1 // pred_region
      %64 = vst [vmem:[#allocation7] sm:$0xff] 0.0
      %65 = vst [vmem:[#allocation7 + $0x8] sm:$0xff] 0.0
      %66 = vst [vmem:[#allocation7 + $0x10] sm:$0xff] 0.0
    $region21: #{tpu_custom_call.1} parent=1 // pred_fallthru
      _
    %s67 = sadd.s32 0, 0
    %s68 = smul.u32 %s67, 16
    %s69 = sadd.s32 %s68, 16
    %p70 = scmp.le.s32.totalorder %s69, 16
    // Predicated region
    $region22: #{tpu_custom_call.1} parent=1 // pred_check
      %p71 = pneg %p70
    $region23: #{tpu_custom_call.1} parent=1 // pred_check_branch
      %73 = sbr.rel (%p71) target = $region25
    $region24: #{tpu_custom_call.1} parent=1 // pred_region
      %v74 = vld [vmem:[#allocation2] sm:$0xff]
      %v75 = vld [vmem:[#allocation2 + $0x8] sm:$0xff]
      %v76 = vxor.u32 %v74, 2147483648
      %v77 = vxor.u32 %v75, 2147483648
      %v78 = vmul.f32 %v76, 1.442695
      %v79 = vpow.pop %v78
      %v80 = vmul.f32 %v77, 1.442695
      %v81 = vpow.pop %v80
      %v82 = vadd.f32 %v79, 1.0
      %v83 = vadd.f32 %v81, 1.0
      %v84 = vrcp.pop %v82
      %v85 = vmul.f32 1.0, %v84
      %v86 = vrcp.pop %v83
      %v87 = vmul.f32 1.0, %v86
      %v88 = vld [vmem:[#allocation5] sm:$0xff]
      %v89 = vld [vmem:[#allocation5 + $0x8] sm:$0xff]
      %v90 = vmul.f32 %v88, %v85
      %v91 = vmul.f32 %v89, %v87
      %v92 = vadd.f32 %v90, %v91
      %v93 = vadd.f32 %v92, 0.0
      %v94 = vadd.f32 %v85, %v87
      %v95 = vadd.f32 %v94, 0.0
      %v96 = vadd.f32 %v88, %v89
      %v97 = vadd.f32 %v96, 0.0
      %v98 = vld [vmem:[#allocation7] sm:$0xff]
      %v99 = vadd.f32 %v98, %v93
      %100 = vst [vmem:[#allocation7] sm:$0xff] %v99
      %s101 = scalar_lea.vmem [#allocation7], 8
      %v102 = vld [vmem:[%s101] sm:$0xff]
      %v103 = vadd.f32 %v102, %v95
      %104 = vst [vmem:[%s101] sm:$0xff] %v103
      %s105 = scalar_lea.vmem [#allocation7], 16
      %v106 = vld [vmem:[%s105] sm:$0xff]
      %v107 = vadd.f32 %v106, %v97
      %108 = vst [vmem:[%s105] sm:$0xff] %v107
    $region25: #{tpu_custom_call.1} parent=1 // pred_fallthru
      _
    %p109 = scmp.lt.s32.totalorder %s68, 16
    %p110 = scmp.gt.s32.totalorder %s69, 16
    %p111 = pnand %p109, %p110
    %p112 = pneg %p111
    // Predicated region
    $region26: #{tpu_custom_call.1} parent=1 // pred_check
      _
    $region27: #{tpu_custom_call.1} parent=1 // pred_check_branch
      %114 = sbr.rel (%p111) target = $region29
    $region28: #{tpu_custom_call.1} parent=1 // pred_region
      %v115 = vld [vmem:[#allocation2] sm:$0xff]
      %v116 = vld [vmem:[#allocation2 + $0x8] sm:$0xff]
      %v117 = vxor.u32 %v115, 2147483648
      %v118 = vxor.u32 %v116, 2147483648
      %v119 = vmul.f32 %v117, 1.442695
      %v120 = vpow.pop %v119
      %v121 = vmul.f32 %v118, 1.442695
      %v122 = vpow.pop %v121
      %v123 = vadd.f32 %v120, 1.0
      %v124 = vadd.f32 %v122, 1.0
      %v125 = vrcp.pop %v123
      %v126 = vmul.f32 1.0, %v125
      %v127 = vrcp.pop %v124
      %v128 = vmul.f32 1.0, %v127
      %v129 = vld [vmem:[#allocation5] sm:$0xff]
      %v130 = vld [vmem:[#allocation5 + $0x8] sm:$0xff]
      %s131 = sadd.s32 %s68, 0
      %v132 = vlaneseq
      %v133 = vshrl.u32 %v132, 7
      %v134 = vadd.s32 %v133, 8
      %v135 = vstv %s131
      %v136 = vadd.s32 %v135, %v133
      %v137 = vadd.s32 %v135, %v134
      %vm138 = vcmp.lt.s32.totalorder %v136, 16
      %vm139 = vcmp.lt.s32.totalorder %v137, 16
      %v140 = vsel %vm138, 1, 0
      %v141 = vsel %vm139, 1, 0
      %vm142 = vcmp.eq.s32.totalorder %v140, 1
      %vm143 = vcmp.eq.s32.totalorder %v141, 1
      %v144 = vsel %vm142, %v126, 0.0
      %v145 = vsel %vm143, %v128, 0.0
      %v146 = vsel %vm142, %v129, 0.0
      %v147 = vsel %vm143, %v130, 0.0
      %v148 = vmul.f32 %v146, %v144
      %v149 = vmul.f32 %v147, %v145
      %v150 = vadd.f32 %v148, %v149
      %v151 = vadd.f32 %v150, 0.0
      %v152 = vadd.f32 %v144, %v145
      %v153 = vadd.f32 %v152, 0.0
      %v154 = vadd.f32 %v146, %v147
      %v155 = vadd.f32 %v154, 0.0
      %v156 = vld [vmem:[#allocation7] sm:$0xff]
      %v157 = vadd.f32 %v156, %v151
      %158 = vst [vmem:[#allocation7] sm:$0xff] %v157
      %s159 = scalar_lea.vmem [#allocation7], 8
      %v160 = vld [vmem:[%s159] sm:$0xff]
      %v161 = vadd.f32 %v160, %v153
      %162 = vst [vmem:[%s159] sm:$0xff] %v161
      %s163 = scalar_lea.vmem [#allocation7], 16
      %v164 = vld [vmem:[%s163] sm:$0xff]
      %v165 = vadd.f32 %v164, %v155
      %166 = vst [vmem:[%s163] sm:$0xff] %v165
    $region29: #{tpu_custom_call.1} parent=1 // pred_fallthru
      _
    // Predicated region
    $region30: #{tpu_custom_call.1} parent=1 // pred_check
      _
    $region31: #{tpu_custom_call.1} parent=1 // pred_check_branch
      %168 = sbr.rel (0) target = $region33
    $region32: #{tpu_custom_call.1} parent=1 // pred_region
      %s170 = ssub.s32 384, 384
      %171 = vsyncadd [#allocation4], %s170
      %s172 = sshll.u32 [#allocation7], 4
      %s173 = int_to_ptr.vmem [resolvable:$true] %s172
      %178 = dma.vmem_to_hbm [thread:$0]  %s173, 384, %s2, [#allocation4], 128, 128, 8
    $region33: #{tpu_custom_call.1} parent=1 // pred_fallthru
      _
    // Predicated region
    $region34: #{tpu_custom_call.1} parent=1 // pred_check
      _
    $region35: #{tpu_custom_call.1} parent=1 // pred_check_branch
      %180 = sbr.rel (0) target = $region37
    $region36: #{tpu_custom_call.1} parent=1 // pred_region
      %181 = dma.done [#allocation4], 384
    $region37: #{tpu_custom_call.1} parent=1 // pred_fallthru
      _
    %182 = vsyncpa [#allocation3], 1
    %183 = vsyncpa [#allocation6], 1
    %184 = vsyncpa [#allocation4], 1

</llo_original>
